<compile_context>
chip_gen: v6e
topology: v6e:2x2x1
jax: 0.10.0
libtpu: 0.0.40
codegen_flags: <defaults>
</compile_context>

<pallas_src>
import jax
import jax.numpy as jnp
from jax import lax
from jax.experimental import pallas as pl
from jax.experimental.pallas import tpu as pltpu

_NEG_BIG = -1e30  # -inf-safe filler for padded class columns / padded-row labels


def _round_up(n, m):
    return ((n + m - 1) // m) * m


def model_with_loss_kernel(x_ref, w_ref, b_ref, labels_ref,
                           out_ref, loss_ref, correct_ref):
    # x_ref: [TB, Dp] (bf16 or f32), w_ref: [Dp, Cp] bf16, b_ref: [1, Cp] f32,
    # labels_ref: [TB, 1] i32 (-1 marks padded batch rows)
    # out_ref: [TB, Cp] f32 (lane dense), loss_ref / correct_ref: [1, 1] f32 in SMEM.

    # --- model: linear classifier on the MXU (bf16 inputs, f32 accumulation) ---
    x = x_ref[...].astype(jnp.bfloat16)          # in-register cast if x arrived as f32
    logits = jnp.dot(x, w_ref[...], preferred_element_type=jnp.float32) + b_ref[...]
    out_ref[...] = logits

    tb, cp = logits.shape
    labels = labels_ref[...]                                   # [TB, 1] i32
    valid = labels >= 0                                        # [TB, 1] bool
    class_ids = lax.broadcasted_iota(jnp.int32, (tb, cp), 1)   # [TB, Cp]

    # --- cross-entropy (numerically stable LSE), all f32 ---
    m = jnp.max(logits, axis=1, keepdims=True)                 # [TB, 1]
    lse = m + jnp.log(jnp.sum(jnp.exp(logits - m), axis=1, keepdims=True))
    # NOTE: out-of-range labels (label >= C) are not guarded (trusted inputs).
    true_logit = jnp.max(jnp.where(class_ids == labels, logits, _NEG_BIG),
                         axis=1, keepdims=True)                # [TB, 1]
    per_sample = jnp.where(valid, lse - true_logit, 0.0)       # [TB, 1]

    # --- accuracy: first argmax (matches torch.max tie-break) vs labels ---
    # (Replacing this min-reduction by `true_logit >= m` would trim the XLU epilogue
    #  for very large Cp but changes tie-break semantics; kept exact.)
    first_max = jnp.min(jnp.where(logits == m, class_ids, cp),
                        axis=1, keepdims=True)                 # [TB, 1] i32
    correct = jnp.logical_and(first_max == labels, valid).astype(jnp.float32)

    # Per-tile partial sums -> SMEM scalars (mean/scale epilogue in the wrapper).
    loss_ref[0, 0] = jnp.sum(per_sample)
    correct_ref[0, 0] = jnp.sum(correct)


def prepare_params(w, b):
    """Pad Linear(D, C) params to lane-dense (128-multiple) shapes, cast W to bf16.

    Call once and reuse across steps -> the pad/cast HBM pass amortizes to zero."""
    D, C = w.shape
    Dp, Cp = _round_up(D, 128), _round_up(C, 128)
    w_p = jnp.pad(w.astype(jnp.bfloat16), ((0, Dp - D), (0, Cp - C)))
    # Padded class columns get a huge negative bias -> never win softmax or argmax.
    b_p = jnp.pad(b.astype(jnp.float32), (0, Cp - C),
                  constant_values=_NEG_BIG).reshape(1, Cp)
    return w_p, b_p, (D, C)


def _pick_batch_tile(B):
    if B <= 128:
        TB = _round_up(B, 16)      # bf16 packs 16 sublanes/vreg -> 16-aligned tile
        return TB, TB
    # 256-row tiles fill the 256-wide MXU (v6e/v7x) but only once there are >= 2 of
    # them, so the "parallel" batch grid keeps both v7x TensorCores busy; 128 rows
    # otherwise (also saturates v5e's 4x128x128 MXU without extra VMEM pressure).
    TB = 256 if B >= 512 else 128
    return TB, _round_up(B, TB)


def _vmem_capacity_bytes():
    try:
        return int(pltpu.get_tpu_info().vmem_capacity_bytes)
    except Exception:
        return 64 * 1024 * 1024    # conservative: v7x per-TensorCore VMEM


def _build_call(TB, Dp, Cp, G, vmem_limit, cost, single_buffer_resident):
    # Grid-resident W / bias (constant index_map) don't need double buffering.
    resident_kw = dict(pipeline_mode=pl.Buffered(1)) if single_buffer_resident else {}
    return pl.pallas_call(
        model_with_loss_kernel,
        grid=(G,),
        in_specs=[
            pl.BlockSpec((TB, Dp), lambda i: (i, 0)),                  # x tile
            pl.BlockSpec((Dp, Cp), lambda i: (0, 0), **resident_kw),   # W (resident)
            pl.BlockSpec((1, Cp), lambda i: (0, 0), **resident_kw),    # bias (resident)
            pl.BlockSpec((TB, 1), lambda i: (i, 0)),                   # labels tile
        ],
        out_specs=(
            pl.BlockSpec((TB, Cp), lambda i: (i, 0)),                          # logits
            pl.BlockSpec((1, 1), lambda i: (i, 0), memory_space=pltpu.SMEM),   # loss sum
            pl.BlockSpec((1, 1), lambda i: (i, 0), memory_space=pltpu.SMEM),   # correct
        ),
        out_shape=(
            jax.ShapeDtypeStruct((G * TB, Cp), jnp.float32),
            jax.ShapeDtypeStruct((G, 1), jnp.float32),
            jax.ShapeDtypeStruct((G, 1), jnp.float32),
        ),
        compiler_params=pltpu.CompilerParams(
            dimension_semantics=("parallel",),
            vmem_limit_bytes=vmem_limit),
        cost_estimate=cost,
    )


def model_with_loss(x, labels, w_p, b_p, dims):
    """x: [B, D] f32, labels: [B] i32, (w_p, b_p, dims) from prepare_params.

    Returns (output [B, C] f32, loss scalar, accuracy scalar in %)."""
    D, C = dims
    B = x.shape[0]
    Dp, Cp = w_p.shape
    TB, Bp = _pick_batch_tile(B)
    G = Bp // TB

    # x: pad only when unavoidable, and fuse the bf16 cast with that mandatory pad pass
    # (4B read + 2B write + 2B kernel read).  If no padding is needed, pass f32 straight
    # through and cast in-register inside the kernel (4B total -> no extra HBM pass).
    if (Bp != B) or (Dp != D):
        x_in = jnp.pad(x.astype(jnp.bfloat16), ((0, Bp - B), (0, Dp - D)))
    else:
        x_in = x
    l_p = jnp.pad(labels.astype(jnp.int32), (0, Bp - B),
                  constant_values=-1).reshape(Bp, 1)

    # VMEM budget from the actual footprint (worst case: everything double-buffered),
    # clamped to ~85% of this chip's VMEM (v5e/v6e: 128 MiB, v7x: 64 MiB per TC).
    x_bytes = TB * Dp * x_in.dtype.itemsize
    out_bytes = TB * Cp * 4
    lbl_bytes = TB * 4
    resident_bytes = Dp * Cp * 2 + Cp * 4
    footprint = 2 * resident_bytes + 2 * (x_bytes + out_bytes + lbl_bytes)
    vmem_limit = min(max(2 * footprint + (4 << 20), 32 << 20),
                     int(0.85 * _vmem_capacity_bytes()))
    # TODO(synk): for very large Dp*Cp (W) or Cp (logits tile) this single-block layout
    # exceeds VMEM (notably v7x's 64 MiB); add a K (Dp) grid axis with an f32 VMEM
    # accumulator + pl.when init/finalize, and a class-tiled online-LSE epilogue.

    bytes_accessed = (Bp * Dp * x_in.dtype.itemsize + Dp * Cp * 2 + Cp * 4 +
                      Bp * 4 + Bp * Cp * 4 + 2 * G * 4)
    cost = pl.CostEstimate(flops=2 * Bp * Dp * Cp,
                           transcendentals=Bp * Cp,
                           bytes_accessed=bytes_accessed)

    try:
        call = _build_call(TB, Dp, Cp, G, vmem_limit, cost, single_buffer_resident=True)
        out_p, part_loss, part_correct = call(x_in, w_p, b_p, l_p)
    except Exception:
        # This jax version rejected single-buffered resident inputs; use defaults.
        call = _build_call(TB, Dp, Cp, G, vmem_limit, cost, single_buffer_resident=False)
        out_p, part_loss, part_correct = call(x_in, w_p, b_p, l_p)

    output = out_p[:B, :C]
    loss = jnp.sum(part_loss) / B
    accuracy = jnp.sum(part_correct) / B * 100.0
    return output, loss, accuracy


if __name__ == "__main__":
    B, D, C = 8, 32, 16   # batch, hidden features, num classes

    key = jax.random.PRNGKey(0)
    kx, kw, kb, kl = jax.random.split(key, 4)

    x = jax.random.normal(kx, (B, D), dtype=jnp.float32)
    w = jax.random.normal(kw, (D, C), dtype=jnp.float32) * 0.1   # Linear(D, C) weights
    b = jax.random.normal(kb, (C,), dtype=jnp.float32) * 0.1
    labels = jax.random.randint(kl, (B,), 0, C, dtype=jnp.int32)

    w_p, b_p, dims = prepare_params(w, b)        # pad/cast once, reuse across calls
    output, loss, accuracy = model_with_loss(x, labels, w_p, b_p, dims)
    jax.block_until_ready((output, loss, accuracy))

    # Pure-JAX reference with the same bf16 MXU-input rounding the kernel feeds the MXU.
    xr = x.astype(jnp.bfloat16).astype(jnp.float32)
    wr = w.astype(jnp.bfloat16).astype(jnp.float32)
    ref_logits = xr @ wr + b[None, :]
    ref_lse = jax.nn.logsumexp(ref_logits, axis=1)
    ref_loss = jnp.mean(ref_lse - ref_logits[jnp.arange(B), labels])
    ref_acc = jnp.mean((jnp.argmax(ref_logits, axis=1) == labels)
                       .astype(jnp.float32)) * 100.0
    assert jnp.allclose(output, ref_logits, atol=1e-4, rtol=1e-4)
    assert jnp.allclose(loss, ref_loss, atol=1e-4, rtol=1e-4)
    assert jnp.allclose(accuracy, ref_acc, atol=1e-4, rtol=1e-4)

    print("KERNEL_OK")
</pallas_src>

<mosaic_0001>
module attributes {stable_mosaic.version = 11 : i64} {
  func.func @model_with_loss_kernel(%arg0: i32, %arg1: memref<16x128xbf16, #tpu.memory_space<vmem>>, %arg2: memref<128x128xbf16, #tpu.memory_space<vmem>>, %arg3: memref<1x128xf32, #tpu.memory_space<vmem>>, %arg4: memref<16x1xi32, #tpu.memory_space<vmem>>, %arg5: memref<16x128xf32, #tpu.memory_space<vmem>>, %arg6: memref<1x1xf32, #tpu.memory_space<smem>>, %arg7: memref<1x1xf32, #tpu.memory_space<smem>>) attributes {dimension_semantics = [#tpu.dimension_semantics<parallel>], iteration_bounds = array<i64: 1>, scalar_prefetch = 0 : i64, scratch_operands = 0 : i64, tpu.core_type = #tpu.core_type<tc>, window_params = [{transform_indices = @transform_0, window_bounds = array<i64: 16, 128>}, {pipeline_mode = #tpu.pipeline_mode<synchronous>, transform_indices = @transform_1, window_bounds = array<i64: 128, 128>}, {pipeline_mode = #tpu.pipeline_mode<synchronous>, transform_indices = @transform_2, window_bounds = array<i64: 1, 128>}, {transform_indices = @transform_3, window_bounds = array<i64: 16, 1>}, {transform_indices = @transform_4, window_bounds = array<i64: 16, 128>}, {transform_indices = @transform_5, window_bounds = array<i64: 1, 1>}, {transform_indices = @transform_6, window_bounds = array<i64: 1, 1>}]} {
    %c0 = arith.constant 0 : index
    %c0_0 = arith.constant 0 : index
    %0 = vector.load %arg1[%c0, %c0_0] : memref<16x128xbf16, #tpu.memory_space<vmem>>, vector<16x128xbf16>
    %c0_1 = arith.constant 0 : index
    %c0_2 = arith.constant 0 : index
    %1 = vector.load %arg2[%c0_1, %c0_2] : memref<128x128xbf16, #tpu.memory_space<vmem>>, vector<128x128xbf16>
    %cst = arith.constant dense<0.000000e+00> : vector<16x128xf32>
    %2 = tpu.matmul %0, %1, %cst {dimension_numbers = #tpu.dot_dimension_numbers<[1], [0], [0], [1], [0, 0, 1, 1], [], []>} : vector<16x128xbf16>, vector<128x128xbf16>, vector<16x128xf32> -> vector<16x128xf32>
    %c0_3 = arith.constant 0 : index
    %c0_4 = arith.constant 0 : index
    %3 = vector.load %arg3[%c0_3, %c0_4] : memref<1x128xf32, #tpu.memory_space<vmem>>, vector<1x128xf32>
    %4 = vector.broadcast %3 : vector<1x128xf32> to vector<16x128xf32>
    %5 = arith.addf %2, %4 : vector<16x128xf32>
    %c0_5 = arith.constant 0 : index
    %c0_6 = arith.constant 0 : index
    %6 = vector.load %arg5[%c0_5, %c0_6] : memref<16x128xf32, #tpu.memory_space<vmem>>, vector<16x128xf32>
    tpu.vector_store %arg5[%c0_5, %c0_6], %5 {strides = array<i32>} : memref<16x128xf32, #tpu.memory_space<vmem>>, vector<16x128xf32>,
    %c0_7 = arith.constant 0 : index
    %c0_8 = arith.constant 0 : index
    %7 = vector.load %arg4[%c0_7, %c0_8] : memref<16x1xi32, #tpu.memory_space<vmem>>, vector<16x1xi32>
    %c0_i32 = arith.constant 0 : i32
    %8 = vector.broadcast %c0_i32 : i32 to vector<16x1xi32>
    %9 = arith.cmpi sge, %7, %8 : vector<16x1xi32>
    %10 = tpu.iota {dimensions = array<i32: 1>} : vector<16x128xi32>
    %cst_9 = arith.constant dense<0xFF800000> : vector<16xf32>
    %11 = vector.multi_reduction <maximumf>, %5, %cst_9 [1] : vector<16x128xf32> to vector<16xf32>
    %12 = vector.shape_cast %11 : vector<16xf32> to vector<16x1xf32>
    %13 = vector.broadcast %12 : vector<16x1xf32> to vector<16x128xf32>
    %14 = arith.subf %5, %13 : vector<16x128xf32>
    %15 = math.exp %14 : vector<16x128xf32>
    %cst_10 = arith.constant dense<0.000000e+00> : vector<16xf32>
    %16 = vector.multi_reduction <add>, %15, %cst_10 [1] : vector<16x128xf32> to vector<16xf32>
    %17 = vector.shape_cast %16 : vector<16xf32> to vector<16x1xf32>
    %18 = math.log %17 : vector<16x1xf32>
    %19 = arith.addf %12, %18 : vector<16x1xf32>
    %20 = vector.broadcast %7 : vector<16x1xi32> to vector<16x128xi32>
    %21 = arith.cmpi eq, %10, %20 : vector<16x128xi32>
    %cst_11 = arith.constant -1.000000e+30 : f32
    %22 = vector.broadcast %cst_11 : f32 to vector<16x128xf32>
    %23 = arith.select %21, %5, %22 : vector<16x128xi1>, vector<16x128xf32>
    %cst_12 = arith.constant dense<0xFF800000> : vector<16xf32>
    %24 = vector.multi_reduction <maximumf>, %23, %cst_12 [1] : vector<16x128xf32> to vector<16xf32>
    %25 = vector.shape_cast %24 : vector<16xf32> to vector<16x1xf32>
    %26 = arith.subf %19, %25 : vector<16x1xf32>
    %cst_13 = arith.constant 0.000000e+00 : f32
    %27 = vector.broadcast %cst_13 : f32 to vector<16x1xf32>
    %28 = arith.select %9, %26, %27 : vector<16x1xi1>, vector<16x1xf32>
    %29 = vector.broadcast %12 : vector<16x1xf32> to vector<16x128xf32>
    %30 = arith.cmpf oeq, %5, %29 : vector<16x128xf32>
    %c128_i32 = arith.constant 128 : i32
    %31 = vector.broadcast %c128_i32 : i32 to vector<16x128xi32>
    %32 = arith.select %30, %10, %31 : vector<16x128xi1>, vector<16x128xi32>
    %cst_14 = arith.constant dense<2147483647> : vector<16xi32>
    %33 = vector.multi_reduction <minsi>, %32, %cst_14 [1] : vector<16x128xi32> to vector<16xi32>
    %34 = vector.shape_cast %33 : vector<16xi32> to vector<16x1xi32>
    %35 = arith.cmpi eq, %34, %7 : vector<16x1xi32>
    %36 = arith.andi %35, %9 : vector<16x1xi1>
    %37 = arith.extui %36 : vector<16x1xi1> to vector<16x1xi32>
    %38 = arith.sitofp %37 : vector<16x1xi32> to vector<16x1xf32>
    %39 = vector.shape_cast %28 : vector<16x1xf32> to vector<1x16x1xf32>
    %cst_15 = arith.constant dense<0.000000e+00> : vector<1xf32>
    %40 = vector.multi_reduction <add>, %39, %cst_15 [1, 2] : vector<1x16x1xf32> to vector<1xf32>
    %41 = vector.shape_cast %40 : vector<1xf32> to vector<1x1x1xf32>
    %42 = vector.extract %41[0, 0, 0] : f32 from vector<1x1x1xf32>
    %c0_16 = arith.constant 0 : index
    %c0_17 = arith.constant 0 : index
    %43 = memref.load %arg6[%c0_16, %c0_17] : memref<1x1xf32, #tpu.memory_space<smem>>
    memref.store %42, %arg6[%c0_16, %c0_17] : memref<1x1xf32, #tpu.memory_space<smem>>
    %44 = vector.shape_cast %38 : vector<16x1xf32> to vector<1x16x1xf32>
    %cst_18 = arith.constant dense<0.000000e+00> : vector<1xf32>
    %45 = vector.multi_reduction <add>, %44, %cst_18 [1, 2] : vector<1x16x1xf32> to vector<1xf32>
    %46 = vector.shape_cast %45 : vector<1xf32> to vector<1x1x1xf32>
    %47 = vector.extract %46[0, 0, 0] : f32 from vector<1x1x1xf32>
    %c0_19 = arith.constant 0 : index
    %c0_20 = arith.constant 0 : index
    %48 = memref.load %arg7[%c0_19, %c0_20] : memref<1x1xf32, #tpu.memory_space<smem>>
    memref.store %47, %arg7[%c0_19, %c0_20] : memref<1x1xf32, #tpu.memory_space<smem>>
    return
  }
  func.func @transform_0(%arg0: i32) -> (i32, i32) {
    %c0_i32 = arith.constant 0 : i32
    %c0_i32_0 = arith.constant 0 : i32
    return %arg0, %c0_i32 : i32, i32
  }
  func.func @transform_1(%arg0: i32) -> (i32, i32) {
    %c0_i32 = arith.constant 0 : i32
    %c0_i32_0 = arith.constant 0 : i32
    %c0_i32_1 = arith.constant 0 : i32
    return %c0_i32, %c0_i32_0 : i32, i32
  }
  func.func @transform_2(%arg0: i32) -> (i32, i32) {
    %c0_i32 = arith.constant 0 : i32
    %c0_i32_0 = arith.constant 0 : i32
    %c0_i32_1 = arith.constant 0 : i32
    return %c0_i32, %c0_i32_0 : i32, i32
  }
  func.func @transform_3(%arg0: i32) -> (i32, i32) {
    %c0_i32 = arith.constant 0 : i32
    %c0_i32_0 = arith.constant 0 : i32
    return %arg0, %c0_i32 : i32, i32
  }
  func.func @transform_4(%arg0: i32) -> (i32, i32) {
    %c0_i32 = arith.constant 0 : i32
    %c0_i32_0 = arith.constant 0 : i32
    return %arg0, %c0_i32 : i32, i32
  }
  func.func @transform_5(%arg0: i32) -> (i32, i32) {
    %c0_i32 = arith.constant 0 : i32
    %c0_i32_0 = arith.constant 0 : i32
    return %arg0, %c0_i32 : i32, i32
  }
  func.func @transform_6(%arg0: i32) -> (i32, i32) {
    %c0_i32 = arith.constant 0 : i32
    %c0_i32_0 = arith.constant 0 : i32
    return %arg0, %c0_i32 : i32, i32
  }
}

module attributes {stable_mosaic.version = 11 : i64} {
  func.func @model_with_loss_kernel(%arg0: i32, %arg1: memref<16x128xbf16, #tpu.memory_space<vmem>>, %arg2: memref<128x128xbf16, #tpu.memory_space<vmem>>, %arg3: memref<1x128xf32, #tpu.memory_space<vmem>>, %arg4: memref<16x1xi32, #tpu.memory_space<vmem>>, %arg5: memref<16x128xf32, #tpu.memory_space<vmem>>, %arg6: memref<1x1xf32, #tpu.memory_space<smem>>, %arg7: memref<1x1xf32, #tpu.memory_space<smem>>) attributes {dimension_semantics = [#tpu.dimension_semantics<parallel>], iteration_bounds = array<i64: 1>, scalar_prefetch = 0 : i64, scratch_operands = 0 : i64, tpu.core_type = #tpu.core_type<tc>, window_params = [{transform_indices = @transform_0, window_bounds = array<i64: 16, 128>}, {pipeline_mode = #tpu.pipeline_mode<synchronous>, transform_indices = @transform_1, window_bounds = array<i64: 128, 128>}, {pipeline_mode = #tpu.pipeline_mode<synchronous>, transform_indices = @transform_2, window_bounds = array<i64: 1, 128>}, {transform_indices = @transform_3, window_bounds = array<i64: 16, 1>}, {transform_indices = @transform_4, window_bounds = array<i64: 16, 128>}, {transform_indices = @transform_5, window_bounds = array<i64: 1, 1>}, {transform_indices = @transform_6, window_bounds = array<i64: 1, 1>}]} {
    %c0 = arith.constant 0 : index
    %c0_0 = arith.constant 0 : index
    %0 = vector.load %arg1[%c0, %c0_0] : memref<16x128xbf16, #tpu.memory_space<vmem>>, vector<16x128xbf16>
    %c0_1 = arith.constant 0 : index
    %c0_2 = arith.constant 0 : index
    %1 = vector.load %arg2[%c0_1, %c0_2] : memref<128x128xbf16, #tpu.memory_space<vmem>>, vector<128x128xbf16>
    %cst = arith.constant dense<0.000000e+00> : vector<16x128xf32>
    %2 = tpu.matmul %0, %1, %cst {dimension_numbers = #tpu.dot_dimension_numbers<[1], [0], [0], [1], [0, 0, 1, 1], [], []>} : vector<16x128xbf16>, vector<128x128xbf16>, vector<16x128xf32> -> vector<16x128xf32>
    %c0_3 = arith.constant 0 : index
    %c0_4 = arith.constant 0 : index
    %3 = vector.load %arg3[%c0_3, %c0_4] : memref<1x128xf32, #tpu.memory_space<vmem>>, vector<1x128xf32>
    %4 = vector.broadcast %3 : vector<1x128xf32> to vector<16x128xf32>
    %5 = arith.addf %2, %4 : vector<16x128xf32>
    %c0_5 = arith.constant 0 : index
    %c0_6 = arith.constant 0 : index
    %6 = vector.load %arg5[%c0_5, %c0_6] : memref<16x128xf32, #tpu.memory_space<vmem>>, vector<16x128xf32>
    tpu.vector_store %arg5[%c0_5, %c0_6], %5 {strides = array<i32>} : memref<16x128xf32, #tpu.memory_space<vmem>>, vector<16x128xf32>,
    %c0_7 = arith.constant 0 : index
    %c0_8 = arith.constant 0 : index
    %7 = vector.load %arg4[%c0_7, %c0_8] : memref<16x1xi32, #tpu.memory_space<vmem>>, vector<16x1xi32>
    %c0_i32 = arith.constant 0 : i32
    %8 = vector.broadcast %c0_i32 : i32 to vector<16x1xi32>
    %9 = arith.cmpi sge, %7, %8 : vector<16x1xi32>
    %10 = tpu.iota {dimensions = array<i32: 1>} : vector<16x128xi32>
    %cst_9 = arith.constant dense<0xFF800000> : vector<16xf32>
    %11 = vector.multi_reduction <maximumf>, %5, %cst_9 [1] : vector<16x128xf32> to vector<16xf32>
    %12 = vector.shape_cast %11 : vector<16xf32> to vector<16x1xf32>
    %13 = vector.broadcast %12 : vector<16x1xf32> to vector<16x128xf32>
    %14 = arith.subf %5, %13 : vector<16x128xf32>
    %15 = math.exp %14 : vector<16x128xf32>
    %cst_10 = arith.constant dense<0.000000e+00> : vector<16xf32>
    %16 = vector.multi_reduction <add>, %15, %cst_10 [1] : vector<16x128xf32> to vector<16xf32>
    %17 = vector.shape_cast %16 : vector<16xf32> to vector<16x1xf32>
    %18 = math.log %17 : vector<16x1xf32>
    %19 = arith.addf %12, %18 : vector<16x1xf32>
    %20 = vector.broadcast %7 : vector<16x1xi32> to vector<16x128xi32>
    %21 = arith.cmpi eq, %10, %20 : vector<16x128xi32>
    %cst_11 = arith.constant -1.000000e+30 : f32
    %22 = vector.broadcast %cst_11 : f32 to vector<16x128xf32>
    %23 = arith.select %21, %5, %22 : vector<16x128xi1>, vector<16x128xf32>
    %cst_12 = arith.constant dense<0xFF800000> : vector<16xf32>
    %24 = vector.multi_reduction <maximumf>, %23, %cst_12 [1] : vector<16x128xf32> to vector<16xf32>
    %25 = vector.shape_cast %24 : vector<16xf32> to vector<16x1xf32>
    %26 = arith.subf %19, %25 : vector<16x1xf32>
    %cst_13 = arith.constant 0.000000e+00 : f32
    %27 = vector.broadcast %cst_13 : f32 to vector<16x1xf32>
    %28 = arith.select %9, %26, %27 : vector<16x1xi1>, vector<16x1xf32>
    %29 = vector.broadcast %12 : vector<16x1xf32> to vector<16x128xf32>
    %30 = arith.cmpf oeq, %5, %29 : vector<16x128xf32>
    %c128_i32 = arith.constant 128 : i32
    %31 = vector.broadcast %c128_i32 : i32 to vector<16x128xi32>
    %32 = arith.select %30, %10, %31 : vector<16x128xi1>, vector<16x128xi32>
    %cst_14 = arith.constant dense<2147483647> : vector<16xi32>
    %33 = vector.multi_reduction <minsi>, %32, %cst_14 [1] : vector<16x128xi32> to vector<16xi32>
    %34 = vector.shape_cast %33 : vector<16xi32> to vector<16x1xi32>
    %35 = arith.cmpi eq, %34, %7 : vector<16x1xi32>
    %36 = arith.andi %35, %9 : vector<16x1xi1>
    %37 = arith.extui %36 : vector<16x1xi1> to vector<16x1xi32>
    %38 = arith.sitofp %37 : vector<16x1xi32> to vector<16x1xf32>
    %39 = vector.shape_cast %28 : vector<16x1xf32> to vector<1x16x1xf32>
    %cst_15 = arith.constant dense<0.000000e+00> : vector<1xf32>
    %40 = vector.multi_reduction <add>, %39, %cst_15 [1, 2] : vector<1x16x1xf32> to vector<1xf32>
    %41 = vector.shape_cast %40 : vector<1xf32> to vector<1x1x1xf32>
    %42 = vector.extract %41[0, 0, 0] : f32 from vector<1x1x1xf32>
    %c0_16 = arith.constant 0 : index
    %c0_17 = arith.constant 0 : index
    %43 = memref.load %arg6[%c0_16, %c0_17] : memref<1x1xf32, #tpu.memory_space<smem>>
    memref.store %42, %arg6[%c0_16, %c0_17] : memref<1x1xf32, #tpu.memory_space<smem>>
    %44 = vector.shape_cast %38 : vector<16x1xf32> to vector<1x16x1xf32>
    %cst_18 = arith.constant dense<0.000000e+00> : vector<1xf32>
    %45 = vector.multi_reduction <add>, %44, %cst_18 [1, 2] : vector<1x16x1xf32> to vector<1xf32>
    %46 = vector.shape_cast %45 : vector<1xf32> to vector<1x1x1xf32>
    %47 = vector.extract %46[0, 0, 0] : f32 from vector<1x1x1xf32>
    %c0_19 = arith.constant 0 : index
    %c0_20 = arith.constant 0 : index
    %48 = memref.load %arg7[%c0_19, %c0_20] : memref<1x1xf32, #tpu.memory_space<smem>>
    memref.store %47, %arg7[%c0_19, %c0_20] : memref<1x1xf32, #tpu.memory_space<smem>>
    return
  }
  func.func @transform_0(%arg0: i32) -> (i32, i32) {
    %c0_i32 = arith.constant 0 : i32
    %c0_i32_0 = arith.constant 0 : i32
    return %arg0, %c0_i32 : i32, i32
  }
  func.func @transform_1(%arg0: i32) -> (i32, i32) {
    %c0_i32 = arith.constant 0 : i32
    %c0_i32_0 = arith.constant 0 : i32
    %c0_i32_1 = arith.constant 0 : i32
    return %c0_i32, %c0_i32_0 : i32, i32
  }
  func.func @transform_2(%arg0: i32) -> (i32, i32) {
    %c0_i32 = arith.constant 0 : i32
    %c0_i32_0 = arith.constant 0 : i32
    %c0_i32_1 = arith.constant 0 : i32
    return %c0_i32, %c0_i32_0 : i32, i32
  }
  func.func @transform_3(%arg0: i32) -> (i32, i32) {
    %c0_i32 = arith.constant 0 : i32
    %c0_i32_0 = arith.constant 0 : i32
    return %arg0, %c0_i32 : i32, i32
  }
  func.func @transform_4(%arg0: i32) -> (i32, i32) {
    %c0_i32 = arith.constant 0 : i32
    %c0_i32_0 = arith.constant 0 : i32
    return %arg0, %c0_i32 : i32, i32
  }
  func.func @transform_5(%arg0: i32) -> (i32, i32) {
    %c0_i32 = arith.constant 0 : i32
    %c0_i32_0 = arith.constant 0 : i32
    return %arg0, %c0_i32 : i32, i32
  }
  func.func @transform_6(%arg0: i32) -> (i32, i32) {
    %c0_i32 = arith.constant 0 : i32
    %c0_i32_0 = arith.constant 0 : i32
    return %arg0, %c0_i32 : i32, i32
  }
}

</mosaic_0001>

<llo_original>
// kernel: tpu_custom_call.1
$region0: #{tpu_custom_call.1}
  #allocation0 [shape = 'u32[]', space=smem, size = 0x4, offset = 0x4, fixed_abs, tag = 'smem constant byte address 0x4 - core index']
  #allocation1 [shape = 'u32[144,128]{1,0:T(1,128)}', space=vmem, size = 0x12000, scoped, tag = 'internal scratch']
  %s0 = inlined_call_operand.vmem [shape: bf16[16,128], index: 0, kind: input, shape index: {}]
  %s1 = inlined_call_operand.hbm [shape: bf16[128,128], index: 1, kind: input, shape index: {}]
  %s2 = inlined_call_operand.vmem [shape: f32[1,128], index: 2, kind: input, shape index: {}]
  %s3 = inlined_call_operand.vmem [shape: s32[16,1], index: 3, kind: input, shape index: {}]
  %s4 = inlined_call_operand.hbm [shape: f32[16,128], index: 4, kind: output, shape index: {0}]
  %s5 = inlined_call_operand.hbm [shape: f32[1,1], index: 5, kind: output, shape index: {1}]
  %s6 = inlined_call_operand.hbm [shape: f32[1,1], index: 6, kind: output, shape index: {2}]
  %7 = xla_tuple %s4, %s5, %s6
  %s8 = sld [smem:[#allocation0]]
  $region46: #{tpu_custom_call.1} parent=0
    _
  %s10 = ssub.s32 1, %s8
  %s11 = scalar_select 0, %s10, %s8
  $region1: #{tpu_custom_call.1} parent=0
    #allocation2 [shape = 'u8[32768]{0}', space=vmem, size = 0x8000, scoped, tag = 'input window, operand 1, single buffered']
    #allocation3 [shape = 's32[1]{0}', space=sflag, size = 0x4, scoped, tag = 'scoped memory for tpu_custom_call.1']
    #allocation4 [shape = 's32[1]{0}', space=sflag, size = 0x4, scoped, tag = 'scoped memory for tpu_custom_call.1']
    #allocation5 [shape = 's32[1]{0}', space=sflag, size = 0x4, scoped, tag = 'scoped memory for tpu_custom_call.1']
    #allocation6 [shape = 'u8[8192]{0}', space=vmem, size = 0x2000, scoped, tag = 'output window, operand 0, single buffered']
    #allocation7 [shape = 'u8[512]{0}', space=smem, size = 0x200, scoped, tag = 'output window, operand 1, single buffered']
    #allocation8 [shape = 'u8[512]{0}', space=smem, size = 0x200, scoped, tag = 'output window, operand 2, single buffered']
    #allocation9 [shape = 's32[1]{0}', space=sflag, size = 0x4, scoped, tag = 'scoped memory for tpu_custom_call.1']
    %12 = vsyncpa [#allocation3], 0
    %13 = vsyncpa [#allocation4], 0
    %14 = vsyncpa [#allocation5], 0
    %15 = vsyncpa [#allocation9], 0
    // Predicated region
    $region2: #{tpu_custom_call.1} parent=1 // pred_check
      _
    $region3: #{tpu_custom_call.1} parent=1 // pred_check_branch
      %17 = sbr.rel (0) target = $region5
    $region4: #{tpu_custom_call.1} parent=1 // pred_region
      _
    $region5: #{tpu_custom_call.1} parent=1 // pred_fallthru
      _
    // Predicated region
    $region6: #{tpu_custom_call.1} parent=1 // pred_check
      _
    $region7: #{tpu_custom_call.1} parent=1 // pred_check_branch
      %19 = sbr.rel (0) target = $region9
    $region8: #{tpu_custom_call.1} parent=1 // pred_region
      %s21 = ssub.s32 1024, 1024
      %22 = vsyncadd [#allocation3], %s21
      %s23 = sshll.u32 [#allocation2], 4
      %s24 = int_to_ptr.vmem [resolvable:$true] %s23
      %29 = dma.hbm_to_vmem [thread:$0]  %s1, 1024, %s24, [#allocation3], 64, 64, 4
    $region9: #{tpu_custom_call.1} parent=1 // pred_fallthru
      _
    // Predicated region
    $region10: #{tpu_custom_call.1} parent=1 // pred_check
      _
    $region11: #{tpu_custom_call.1} parent=1 // pred_check_branch
      %31 = sbr.rel (0) target = $region13
    $region12: #{tpu_custom_call.1} parent=1 // pred_region
      _
    $region13: #{tpu_custom_call.1} parent=1 // pred_fallthru
      _
    // Predicated region
    $region14: #{tpu_custom_call.1} parent=1 // pred_check
      _
    $region15: #{tpu_custom_call.1} parent=1 // pred_check_branch
      %33 = sbr.rel (0) target = $region17
    $region16: #{tpu_custom_call.1} parent=1 // pred_region
      _
    $region17: #{tpu_custom_call.1} parent=1 // pred_fallthru
      _
    // Predicated region
    $region18: #{tpu_custom_call.1} parent=1 // pred_check
      _
    $region19: #{tpu_custom_call.1} parent=1 // pred_check_branch
      %35 = sbr.rel (0) target = $region21
    $region20: #{tpu_custom_call.1} parent=1 // pred_region
      %36 = dma.done [#allocation3], 1024
    $region21: #{tpu_custom_call.1} parent=1 // pred_fallthru
      _
    %v38 = vld [vmem:[%s0] sm:$0xf]
    %v39 = vld [vmem:[%s0 + $0x4] sm:$0xf]
    %v40 = vld [vmem:[#allocation2] sm:$0xf]
    %v41 = vld [vmem:[#allocation2 + $0x4] sm:$0xf]
    %v42 = vld [vmem:[#allocation2 + $0x8] sm:$0xf]
    %v43 = vld [vmem:[#allocation2 + $0xc] sm:$0xf]
    %v44 = vld [vmem:[#allocation2 + $0x10] sm:$0xf]
    %v45 = vld [vmem:[#allocation2 + $0x14] sm:$0xf]
    %v46 = vld [vmem:[#allocation2 + $0x18] sm:$0xf]
    %v47 = vld [vmem:[#allocation2 + $0x1c] sm:$0xf]
    %v48 = vld [vmem:[#allocation2 + $0x20] sm:$0xf]
    %v49 = vld [vmem:[#allocation2 + $0x24] sm:$0xf]
    %v50 = vld [vmem:[#allocation2 + $0x28] sm:$0xf]
    %v51 = vld [vmem:[#allocation2 + $0x2c] sm:$0xf]
    %v52 = vld [vmem:[#allocation2 + $0x30] sm:$0xf]
    %v53 = vld [vmem:[#allocation2 + $0x34] sm:$0xf]
    %v54 = vld [vmem:[#allocation2 + $0x38] sm:$0xf]
    %v55 = vld [vmem:[#allocation2 + $0x3c] sm:$0xf]
    %v56 = vld [vmem:[%s2] sm:$0x1]
    %v58 = vlaneseq
    %v59 = vshrl.u32 %v58, 7
    %v60 = vsub.s32 0, %v59
    %v61 = vrot.slane %v56, %v60
    %v65 = vunpack.c.l.b16 %v38
    %v66 = vunpack.c.l.b16 %v39
    %v67 = vpack.c.b16 %v66, %v65
    %v85 = vunpack.c.l.b16 %v40
    %v86 = vunpack.c.l.b16 %v41
    %v87 = vunpack.c.l.b16 %v42
    %v88 = vunpack.c.l.b16 %v43
    %v89 = vunpack.c.l.b16 %v44
    %v90 = vunpack.c.l.b16 %v45
    %v91 = vunpack.c.l.b16 %v46
    %v92 = vunpack.c.l.b16 %v47
    %v93 = vunpack.c.l.b16 %v48
    %v94 = vunpack.c.l.b16 %v49
    %v95 = vunpack.c.l.b16 %v50
    %v96 = vunpack.c.l.b16 %v51
    %v97 = vunpack.c.l.b16 %v52
    %v98 = vunpack.c.l.b16 %v53
    %v99 = vunpack.c.l.b16 %v54
    %v100 = vunpack.c.l.b16 %v55
    %v101 = vpack.c.b16 %v86, %v85
    %v102 = vpack.c.b16 %v88, %v87
    %v103 = vpack.c.b16 %v90, %v89
    %v104 = vpack.c.b16 %v92, %v91
    %v105 = vpack.c.b16 %v94, %v93
    %v106 = vpack.c.b16 %v96, %v95
    %v107 = vpack.c.b16 %v98, %v97
    %v108 = vpack.c.b16 %v100, %v99
    %117 = vmatprep.subr.bf16.mxu0 0
    %118 = vmatpush1.bf16.msra.mxu0 %v108
    %119 = vmatprep.subr.bf16.mxu0 0
    %120 = vmatpush1.bf16.msra.mxu0 %v107
    %121 = vmatprep.subr.bf16.mxu0 0
    %122 = vmatpush1.bf16.msra.mxu0 %v106
    %123 = vmatprep.subr.bf16.mxu0 0
    %124 = vmatpush1.bf16.msra.mxu0 %v105
    %125 = vmatprep.subr.bf16.mxu0 0
    %126 = vmatpush1.bf16.msra.mxu0 %v104
    %127 = vmatprep.subr.bf16.mxu0 0
    %128 = vmatpush1.bf16.msra.mxu0 %v103
    %129 = vmatprep.subr.bf16.mxu0 0
    %130 = vmatpush1.bf16.msra.mxu0 %v102
    %131 = vmatprep.subr.bf16.mxu0 0
    %132 = vmatpush1.bf16.msra.mxu0 %v101
    %133 = vmatprep.subr.bf16.mxu0 0
    %134 = vmatpush2.bf16.msra.mxu0 0
    %135 = vmatprep.subr.bf16.mxu0 0
    %136 = vmatpush2.bf16.msra.mxu0 0
    %137 = vmatprep.subr.bf16.mxu0 0
    %138 = vmatpush2.bf16.msra.mxu0 0
    %139 = vmatprep.subr.bf16.mxu0 0
    %140 = vmatpush2.bf16.msra.mxu0 0
    %141 = vmatprep.subr.bf16.mxu0 0
    %142 = vmatpush2.bf16.msra.mxu0 0
    %143 = vmatprep.subr.bf16.mxu0 0
    %144 = vmatpush2.bf16.msra.mxu0 0
    %145 = vmatprep.subr.bf16.mxu0 0
    %146 = vmatpush2.bf16.msra.mxu0 0
    %147 = vmatprep.subr.bf16.mxu0 0
    %148 = vmatpush2.bf16.msra.mxu0 0
    %149 = vmatprep.mubr.bf16.mxu0 0
    %150 = vmatmul.mubr.bf16.gmra.mxu0 %v67
    %v151 = vpop.f32.mrf.mxu0
    %v152 = vadd.f32 %v61, %v151
    %v153 = vpop.f32.mrf.mxu0
    %v154 = vpop.f32.mrf.mxu0
    %v155 = vadd.f32 %v61, %v154
    %v156 = vpop.f32.mrf.mxu0
    %157 = vdwg.mxu0
    %158 = vst [vmem:[#allocation6] sm:$0xff] %v152
    %159 = vst [vmem:[#allocation6 + $0x8] sm:$0xff] %v155
    %v160 = vld [vmem:[%s3] sm:$0xff]
    %v161 = vld [vmem:[%s3 + $0x8] sm:$0xff]
    %vm162 = vcmp.ge.s32.totalorder %v160, 0
    %vm163 = vcmp.ge.s32.totalorder %v161, 0
    %v164 = vlaneseq
    %v165 = vand.u32 %v164, 127
    %166 = vmax.xlane.f32.xlu0 %v152
    %v167 = vpop.xlane.xlu0 %166
    %168 = vmax.xlane.f32.xlu0 %v155
    %v169 = vpop.xlane.xlu0 %168
    %v170 = vsub.f32 %v152, %v167
    %v171 = vsub.f32 %v155, %v169
    %v172 = vmul.f32 %v170, 1.442695
    %v173 = vpow.pop %v172
    %v174 = vmul.f32 %v171, 1.442695
    %v175 = vpow.pop %v174
    %176 = vadd.xlane.f32.xlu0 %v173
    %v177 = vpop.xlane.xlu0 %176
    %178 = vadd.xlane.f32.xlu0 %v175
    %v179 = vpop.xlane.xlu0 %178
    %v180 = vlog2.pop %v177
    %v181 = vmul.f32 %v180, 0.6931472
    %v182 = vlog2.pop %v179
    %v183 = vmul.f32 %v182, 0.6931472
    %v184 = vadd.f32 %v167, %v181
    %v185 = vadd.f32 %v169, %v183
    %186 = vset.pattern.permute.xlu0 0
    %187 = vperm.xlu0 %186, %v160
    %v188 = vpop.permute.xlu0 %187
    %189 = vset.pattern.permute.xlu0 0
    %190 = vperm.xlu0 %189, %v161
    %v191 = vpop.permute.xlu0 %190
    %vm192 = vcmp.eq.s32.totalorder %v165, %v188
    %vm193 = vcmp.eq.s32.totalorder %v165, %v191
    %v194 = vsel %vm192, %v152, -1e+30
    %v195 = vsel %vm193, %v155, -1e+30
    %196 = vmax.xlane.f32.xlu0 %v194
    %v197 = vpop.xlane.xlu0 %196
    %198 = vmax.xlane.f32.xlu0 %v195
    %v199 = vpop.xlane.xlu0 %198
    %v200 = vsub.f32 %v184, %v197
    %v201 = vsub.f32 %v185, %v199
    %v202 = vsel %vm162, %v200, 0.0
    %v203 = vsel %vm163, %v201, 0.0
    %vm204 = vcmp.eq.f32.partialorder %v152, %v167
    %vm205 = vcmp.eq.f32.partialorder %v155, %v169
    %v206 = vsel %vm204, %v165, 128
    %v207 = vsel %vm205, %v165, 128
    %v208 = vand.u32 %v206, 65535
    %v209 = vshra.s32 %v206, 16
    %v210 = vcvt.s32.f32 %v208
    %v211 = vcvt.s32.f32 %v209
    %212 = vmin.xlane.f32.xlu0 %v211
    %v213 = vpop.xlane.xlu0 %212
    %vm214 = vcmp.eq.f32.partialorder %v211, %v213
    %v215 = vsel %vm214, %v210, inf
    %216 = vmin.xlane.f32.xlu0 %v215
    %v217 = vpop.xlane.xlu0 %216
    %v218 = vcvt.f32.s32 %v217
    %v219 = vcvt.f32.s32 %v213
    %v220 = vshll.u32 %v219, 16
    %v221 = vadd.s32 %v220, %v218
    %v222 = vand.u32 %v207, 65535
    %v223 = vshra.s32 %v207, 16
    %v224 = vcvt.s32.f32 %v222
    %v225 = vcvt.s32.f32 %v223
    %226 = vmin.xlane.f32.xlu0 %v225
    %v227 = vpop.xlane.xlu0 %226
    %vm228 = vcmp.eq.f32.partialorder %v225, %v227
    %v229 = vsel %vm228, %v224, inf
    %230 = vmin.xlane.f32.xlu0 %v229
    %v231 = vpop.xlane.xlu0 %230
    %v232 = vcvt.f32.s32 %v231
    %v233 = vcvt.f32.s32 %v227
    %v234 = vshll.u32 %v233, 16
    %v235 = vadd.s32 %v234, %v232
    %vm236 = vcmp.eq.s32.totalorder %v221, %v160
    %vm237 = vcmp.eq.s32.totalorder %v235, %v161
    %vm238 = vmand %vm236, %vm162
    %vm239 = vmand %vm237, %vm163
    %v240 = vsel %vm238, 1, 0
    %v241 = vsel %vm239, 1, 0
    %v242 = vcvt.s32.f32 %v240
    %v243 = vcvt.s32.f32 %v241
    %vm244 = vcmask 7168
    %v245 = vsel %vm244, %v202, 0.0
    %v246 = vsel %vm244, %v203, 0.0
    %v247 = vadd.f32 %v245, %v246
    %248 = vadd.xlane.f32.xlu0 %v247
    %v249 = vpop.xlane.xlu0 %248
    %v250 = vrot.slane %v249, 4
    %v251 = vadd.f32 %v249, %v250
    %v252 = vrot.slane %v251, 2
    %v253 = vadd.f32 %v251, %v252
    %v254 = vrot.slane %v253, 1
    %v255 = vadd.f32 %v253, %v254
    %s256 = vtos %v255
    %s257 = scalar_lea.smem [#allocation7], 0
    %258 = sst [smem:[%s257]] %s256
    %v259 = vsel %vm244, %v242, 0.0
    %v260 = vsel %vm244, %v243, 0.0
    %v261 = vadd.f32 %v259, %v260
    %262 = vadd.xlane.f32.xlu0 %v261
    %v263 = vpop.xlane.xlu0 %262
    %v264 = vrot.slane %v263, 4
    %v265 = vadd.f32 %v263, %v264
    %v266 = vrot.slane %v265, 2
    %v267 = vadd.f32 %v265, %v266
    %v268 = vrot.slane %v267, 1
    %v269 = vadd.f32 %v267, %v268
    %s270 = vtos %v269
    %s271 = scalar_lea.smem [#allocation8], 0
    %272 = sst [smem:[%s271]] %s270
    // Predicated region
    $region22: #{tpu_custom_call.1} parent=1 // pred_check
      _
    $region23: #{tpu_custom_call.1} parent=1 // pred_check_branch
      %274 = sbr.rel (0) target = $region25
    $region24: #{tpu_custom_call.1} parent=1 // pred_region
      %s276 = ssub.s32 256, 256
      %277 = vsyncadd [#allocation4], %s276
      %s278 = sshll.u32 [#allocation6], 4
      %s279 = int_to_ptr.vmem [resolvable:$true] %s278
      %284 = dma.vmem_to_hbm [thread:$0]  %s279, 256, %s4, [#allocation4], 128, 128, 8
    $region25: #{tpu_custom_call.1} parent=1 // pred_fallthru
      _
    // Predicated region
    $region26: #{tpu_custom_call.1} parent=1 // pred_check
      _
    $region27: #{tpu_custom_call.1} parent=1 // pred_check_branch
      %286 = sbr.rel (0) target = $region29
    $region28: #{tpu_custom_call.1} parent=1 // pred_region
      %s288 = ssub.s32 16, 16
      %289 = vsyncadd [#allocation5], %s288
      %292 = dma.smem_to_hbm [#allocation7], 16, %s5, [#allocation5]
    $region29: #{tpu_custom_call.1} parent=1 // pred_fallthru
      _
    // Predicated region
    $region30: #{tpu_custom_call.1} parent=1 // pred_check
      _
    $region31: #{tpu_custom_call.1} parent=1 // pred_check_branch
      %294 = sbr.rel (0) target = $region33
    $region32: #{tpu_custom_call.1} parent=1 // pred_region
      %s296 = ssub.s32 16, 16
      %297 = vsyncadd [#allocation9], %s296
      %300 = dma.smem_to_hbm [#allocation8], 16, %s6, [#allocation9]
    $region33: #{tpu_custom_call.1} parent=1 // pred_fallthru
      _
    // Predicated region
    $region34: #{tpu_custom_call.1} parent=1 // pred_check
      _
    $region35: #{tpu_custom_call.1} parent=1 // pred_check_branch
      %302 = sbr.rel (0) target = $region37
    $region36: #{tpu_custom_call.1} parent=1 // pred_region
      %303 = dma.done [#allocation4], 256
    $region37: #{tpu_custom_call.1} parent=1 // pred_fallthru
      _
    // Predicated region
    $region38: #{tpu_custom_call.1} parent=1 // pred_check
      _
    $region39: #{tpu_custom_call.1} parent=1 // pred_check_branch
      %305 = sbr.rel (0) target = $region41
    $region40: #{tpu_custom_call.1} parent=1 // pred_region
      %306 = dma.done [#allocation5], 16
    $region41: #{tpu_custom_call.1} parent=1 // pred_fallthru
      _
    // Predicated region
    $region42: #{tpu_custom_call.1} parent=1 // pred_check
      _
    $region43: #{tpu_custom_call.1} parent=1 // pred_check_branch
      %308 = sbr.rel (0) target = $region45
    $region44: #{tpu_custom_call.1} parent=1 // pred_region
      %309 = dma.done [#allocation9], 16
    $region45: #{tpu_custom_call.1} parent=1 // pred_fallthru
      _
    %310 = sfence
    %311 = vsyncpa [#allocation3], 1
    %312 = vsyncpa [#allocation4], 1
    %313 = vsyncpa [#allocation5], 1
    %314 = vsyncpa [#allocation9], 1

// kernel: tpu_custom_call.1
$region0: #{tpu_custom_call.1}
  #allocation0 [shape = 'u32[]', space=smem, size = 0x4, offset = 0x4, fixed_abs, tag = 'smem constant byte address 0x4 - core index']
  #allocation1 [shape = 'u32[144,128]{1,0:T(1,128)}', space=vmem, size = 0x12000, scoped, tag = 'internal scratch']
  %s0 = inlined_call_operand.vmem [shape: bf16[16,128], index: 0, kind: input, shape index: {}]
  %s1 = inlined_call_operand.hbm [shape: bf16[128,128], index: 1, kind: input, shape index: {}]
  %s2 = inlined_call_operand.vmem [shape: f32[1,128], index: 2, kind: input, shape index: {}]
  %s3 = inlined_call_operand.vmem [shape: s32[16,1], index: 3, kind: input, shape index: {}]
  %s4 = inlined_call_operand.hbm [shape: f32[16,128], index: 4, kind: output, shape index: {0}]
  %s5 = inlined_call_operand.hbm [shape: f32[1,1], index: 5, kind: output, shape index: {1}]
  %s6 = inlined_call_operand.hbm [shape: f32[1,1], index: 6, kind: output, shape index: {2}]
  %7 = xla_tuple %s4, %s5, %s6
  %s8 = sld [smem:[#allocation0]]
  $region46: #{tpu_custom_call.1} parent=0
    _
  %s10 = ssub.s32 1, %s8
  %s11 = scalar_select 0, %s10, %s8
  $region1: #{tpu_custom_call.1} parent=0
    #allocation2 [shape = 'u8[32768]{0}', space=vmem, size = 0x8000, scoped, tag = 'input window, operand 1, single buffered']
    #allocation3 [shape = 's32[1]{0}', space=sflag, size = 0x4, scoped, tag = 'scoped memory for tpu_custom_call.1']
    #allocation4 [shape = 's32[1]{0}', space=sflag, size = 0x4, scoped, tag = 'scoped memory for tpu_custom_call.1']
    #allocation5 [shape = 's32[1]{0}', space=sflag, size = 0x4, scoped, tag = 'scoped memory for tpu_custom_call.1']
    #allocation6 [shape = 'u8[8192]{0}', space=vmem, size = 0x2000, scoped, tag = 'output window, operand 0, single buffered']
    #allocation7 [shape = 'u8[512]{0}', space=smem, size = 0x200, scoped, tag = 'output window, operand 1, single buffered']
    #allocation8 [shape = 'u8[512]{0}', space=smem, size = 0x200, scoped, tag = 'output window, operand 2, single buffered']
    #allocation9 [shape = 's32[1]{0}', space=sflag, size = 0x4, scoped, tag = 'scoped memory for tpu_custom_call.1']
    %12 = vsyncpa [#allocation3], 0
    %13 = vsyncpa [#allocation4], 0
    %14 = vsyncpa [#allocation5], 0
    %15 = vsyncpa [#allocation9], 0
    // Predicated region
    $region2: #{tpu_custom_call.1} parent=1 // pred_check
      _
    $region3: #{tpu_custom_call.1} parent=1 // pred_check_branch
      %17 = sbr.rel (0) target = $region5
    $region4: #{tpu_custom_call.1} parent=1 // pred_region
      _
    $region5: #{tpu_custom_call.1} parent=1 // pred_fallthru
      _
    // Predicated region
    $region6: #{tpu_custom_call.1} parent=1 // pred_check
      _
    $region7: #{tpu_custom_call.1} parent=1 // pred_check_branch
      %19 = sbr.rel (0) target = $region9
    $region8: #{tpu_custom_call.1} parent=1 // pred_region
      %s21 = ssub.s32 1024, 1024
      %22 = vsyncadd [#allocation3], %s21
      %s23 = sshll.u32 [#allocation2], 4
      %s24 = int_to_ptr.vmem [resolvable:$true] %s23
      %29 = dma.hbm_to_vmem [thread:$0]  %s1, 1024, %s24, [#allocation3], 64, 64, 4
    $region9: #{tpu_custom_call.1} parent=1 // pred_fallthru
      _
    // Predicated region
    $region10: #{tpu_custom_call.1} parent=1 // pred_check
      _
    $region11: #{tpu_custom_call.1} parent=1 // pred_check_branch
      %31 = sbr.rel (0) target = $region13
    $region12: #{tpu_custom_call.1} parent=1 // pred_region
      _
    $region13: #{tpu_custom_call.1} parent=1 // pred_fallthru
      _
    // Predicated region
    $region14: #{tpu_custom_call.1} parent=1 // pred_check
      _
    $region15: #{tpu_custom_call.1} parent=1 // pred_check_branch
      %33 = sbr.rel (0) target = $region17
    $region16: #{tpu_custom_call.1} parent=1 // pred_region
      _
    $region17: #{tpu_custom_call.1} parent=1 // pred_fallthru
      _
    // Predicated region
    $region18: #{tpu_custom_call.1} parent=1 // pred_check
      _
    $region19: #{tpu_custom_call.1} parent=1 // pred_check_branch
      %35 = sbr.rel (0) target = $region21
    $region20: #{tpu_custom_call.1} parent=1 // pred_region
      %36 = dma.done [#allocation3], 1024
    $region21: #{tpu_custom_call.1} parent=1 // pred_fallthru
      _
    %v38 = vld [vmem:[%s0] sm:$0xf]
    %v39 = vld [vmem:[%s0 + $0x4] sm:$0xf]
    %v40 = vld [vmem:[#allocation2] sm:$0xf]
    %v41 = vld [vmem:[#allocation2 + $0x4] sm:$0xf]
    %v42 = vld [vmem:[#allocation2 + $0x8] sm:$0xf]
    %v43 = vld [vmem:[#allocation2 + $0xc] sm:$0xf]
    %v44 = vld [vmem:[#allocation2 + $0x10] sm:$0xf]
    %v45 = vld [vmem:[#allocation2 + $0x14] sm:$0xf]
    %v46 = vld [vmem:[#allocation2 + $0x18] sm:$0xf]
    %v47 = vld [vmem:[#allocation2 + $0x1c] sm:$0xf]
    %v48 = vld [vmem:[#allocation2 + $0x20] sm:$0xf]
    %v49 = vld [vmem:[#allocation2 + $0x24] sm:$0xf]
    %v50 = vld [vmem:[#allocation2 + $0x28] sm:$0xf]
    %v51 = vld [vmem:[#allocation2 + $0x2c] sm:$0xf]
    %v52 = vld [vmem:[#allocation2 + $0x30] sm:$0xf]
    %v53 = vld [vmem:[#allocation2 + $0x34] sm:$0xf]
    %v54 = vld [vmem:[#allocation2 + $0x38] sm:$0xf]
    %v55 = vld [vmem:[#allocation2 + $0x3c] sm:$0xf]
    %v56 = vld [vmem:[%s2] sm:$0x1]
    %v58 = vlaneseq
    %v59 = vshrl.u32 %v58, 7
    %v60 = vsub.s32 0, %v59
    %v61 = vrot.slane %v56, %v60
    %v65 = vunpack.c.l.b16 %v38
    %v66 = vunpack.c.l.b16 %v39
    %v67 = vpack.c.b16 %v66, %v65
    %v85 = vunpack.c.l.b16 %v40
    %v86 = vunpack.c.l.b16 %v41
    %v87 = vunpack.c.l.b16 %v42
    %v88 = vunpack.c.l.b16 %v43
    %v89 = vunpack.c.l.b16 %v44
    %v90 = vunpack.c.l.b16 %v45
    %v91 = vunpack.c.l.b16 %v46
    %v92 = vunpack.c.l.b16 %v47
    %v93 = vunpack.c.l.b16 %v48
    %v94 = vunpack.c.l.b16 %v49
    %v95 = vunpack.c.l.b16 %v50
    %v96 = vunpack.c.l.b16 %v51
    %v97 = vunpack.c.l.b16 %v52
    %v98 = vunpack.c.l.b16 %v53
    %v99 = vunpack.c.l.b16 %v54
    %v100 = vunpack.c.l.b16 %v55
    %v101 = vpack.c.b16 %v86, %v85
    %v102 = vpack.c.b16 %v88, %v87
    %v103 = vpack.c.b16 %v90, %v89
    %v104 = vpack.c.b16 %v92, %v91
    %v105 = vpack.c.b16 %v94, %v93
    %v106 = vpack.c.b16 %v96, %v95
    %v107 = vpack.c.b16 %v98, %v97
    %v108 = vpack.c.b16 %v100, %v99
    %117 = vmatprep.subr.bf16.mxu0 0
    %118 = vmatpush1.bf16.msra.mxu0 %v108
    %119 = vmatprep.subr.bf16.mxu0 0
    %120 = vmatpush1.bf16.msra.mxu0 %v107
    %121 = vmatprep.subr.bf16.mxu0 0
    %122 = vmatpush1.bf16.msra.mxu0 %v106
    %123 = vmatprep.subr.bf16.mxu0 0
    %124 = vmatpush1.bf16.msra.mxu0 %v105
    %125 = vmatprep.subr.bf16.mxu0 0
    %126 = vmatpush1.bf16.msra.mxu0 %v104
    %127 = vmatprep.subr.bf16.mxu0 0
    %128 = vmatpush1.bf16.msra.mxu0 %v103
    %129 = vmatprep.subr.bf16.mxu0 0
    %130 = vmatpush1.bf16.msra.mxu0 %v102
    %131 = vmatprep.subr.bf16.mxu0 0
    %132 = vmatpush1.bf16.msra.mxu0 %v101
    %133 = vmatprep.subr.bf16.mxu0 0
    %134 = vmatpush2.bf16.msra.mxu0 0
    %135 = vmatprep.subr.bf16.mxu0 0
    %136 = vmatpush2.bf16.msra.mxu0 0
    %137 = vmatprep.subr.bf16.mxu0 0
    %138 = vmatpush2.bf16.msra.mxu0 0
    %139 = vmatprep.subr.bf16.mxu0 0
    %140 = vmatpush2.bf16.msra.mxu0 0
    %141 = vmatprep.subr.bf16.mxu0 0
    %142 = vmatpush2.bf16.msra.mxu0 0
    %143 = vmatprep.subr.bf16.mxu0 0
    %144 = vmatpush2.bf16.msra.mxu0 0
    %145 = vmatprep.subr.bf16.mxu0 0
    %146 = vmatpush2.bf16.msra.mxu0 0
    %147 = vmatprep.subr.bf16.mxu0 0
    %148 = vmatpush2.bf16.msra.mxu0 0
    %149 = vmatprep.mubr.bf16.mxu0 0
    %150 = vmatmul.mubr.bf16.gmra.mxu0 %v67
    %v151 = vpop.f32.mrf.mxu0
    %v152 = vadd.f32 %v61, %v151
    %v153 = vpop.f32.mrf.mxu0
    %v154 = vpop.f32.mrf.mxu0
    %v155 = vadd.f32 %v61, %v154
    %v156 = vpop.f32.mrf.mxu0
    %157 = vdwg.mxu0
    %158 = vst [vmem:[#allocation6] sm:$0xff] %v152
    %159 = vst [vmem:[#allocation6 + $0x8] sm:$0xff] %v155
    %v160 = vld [vmem:[%s3] sm:$0xff]
    %v161 = vld [vmem:[%s3 + $0x8] sm:$0xff]
    %vm162 = vcmp.ge.s32.totalorder %v160, 0
    %vm163 = vcmp.ge.s32.totalorder %v161, 0
    %v164 = vlaneseq
    %v165 = vand.u32 %v164, 127
    %166 = vmax.xlane.f32.xlu0 %v152
    %v167 = vpop.xlane.xlu0 %166
    %168 = vmax.xlane.f32.xlu0 %v155
    %v169 = vpop.xlane.xlu0 %168
    %v170 = vsub.f32 %v152, %v167
    %v171 = vsub.f32 %v155, %v169
    %v172 = vmul.f32 %v170, 1.442695
    %v173 = vpow.pop %v172
    %v174 = vmul.f32 %v171, 1.442695
    %v175 = vpow.pop %v174
    %176 = vadd.xlane.f32.xlu0 %v173
    %v177 = vpop.xlane.xlu0 %176
    %178 = vadd.xlane.f32.xlu0 %v175
    %v179 = vpop.xlane.xlu0 %178
    %v180 = vlog2.pop %v177
    %v181 = vmul.f32 %v180, 0.6931472
    %v182 = vlog2.pop %v179
    %v183 = vmul.f32 %v182, 0.6931472
    %v184 = vadd.f32 %v167, %v181
    %v185 = vadd.f32 %v169, %v183
    %186 = vset.pattern.permute.xlu0 0
    %187 = vperm.xlu0 %186, %v160
    %v188 = vpop.permute.xlu0 %187
    %189 = vset.pattern.permute.xlu0 0
    %190 = vperm.xlu0 %189, %v161
    %v191 = vpop.permute.xlu0 %190
    %vm192 = vcmp.eq.s32.totalorder %v165, %v188
    %vm193 = vcmp.eq.s32.totalorder %v165, %v191
    %v194 = vsel %vm192, %v152, -1e+30
    %v195 = vsel %vm193, %v155, -1e+30
    %196 = vmax.xlane.f32.xlu0 %v194
    %v197 = vpop.xlane.xlu0 %196
    %198 = vmax.xlane.f32.xlu0 %v195
    %v199 = vpop.xlane.xlu0 %198
    %v200 = vsub.f32 %v184, %v197
    %v201 = vsub.f32 %v185, %v199
    %v202 = vsel %vm162, %v200, 0.0
    %v203 = vsel %vm163, %v201, 0.0
    %vm204 = vcmp.eq.f32.partialorder %v152, %v167
    %vm205 = vcmp.eq.f32.partialorder %v155, %v169
    %v206 = vsel %vm204, %v165, 128
    %v207 = vsel %vm205, %v165, 128
    %v208 = vand.u32 %v206, 65535
    %v209 = vshra.s32 %v206, 16
    %v210 = vcvt.s32.f32 %v208
    %v211 = vcvt.s32.f32 %v209
    %212 = vmin.xlane.f32.xlu0 %v211
    %v213 = vpop.xlane.xlu0 %212
    %vm214 = vcmp.eq.f32.partialorder %v211, %v213
    %v215 = vsel %vm214, %v210, inf
    %216 = vmin.xlane.f32.xlu0 %v215
    %v217 = vpop.xlane.xlu0 %216
    %v218 = vcvt.f32.s32 %v217
    %v219 = vcvt.f32.s32 %v213
    %v220 = vshll.u32 %v219, 16
    %v221 = vadd.s32 %v220, %v218
    %v222 = vand.u32 %v207, 65535
    %v223 = vshra.s32 %v207, 16
    %v224 = vcvt.s32.f32 %v222
    %v225 = vcvt.s32.f32 %v223
    %226 = vmin.xlane.f32.xlu0 %v225
    %v227 = vpop.xlane.xlu0 %226
    %vm228 = vcmp.eq.f32.partialorder %v225, %v227
    %v229 = vsel %vm228, %v224, inf
    %230 = vmin.xlane.f32.xlu0 %v229
    %v231 = vpop.xlane.xlu0 %230
    %v232 = vcvt.f32.s32 %v231
    %v233 = vcvt.f32.s32 %v227
    %v234 = vshll.u32 %v233, 16
    %v235 = vadd.s32 %v234, %v232
    %vm236 = vcmp.eq.s32.totalorder %v221, %v160
    %vm237 = vcmp.eq.s32.totalorder %v235, %v161
    %vm238 = vmand %vm236, %vm162
    %vm239 = vmand %vm237, %vm163
    %v240 = vsel %vm238, 1, 0
    %v241 = vsel %vm239, 1, 0
    %v242 = vcvt.s32.f32 %v240
    %v243 = vcvt.s32.f32 %v241
    %vm244 = vcmask 7168
    %v245 = vsel %vm244, %v202, 0.0
    %v246 = vsel %vm244, %v203, 0.0
    %v247 = vadd.f32 %v245, %v246
    %248 = vadd.xlane.f32.xlu0 %v247
    %v249 = vpop.xlane.xlu0 %248
    %v250 = vrot.slane %v249, 4
    %v251 = vadd.f32 %v249, %v250
    %v252 = vrot.slane %v251, 2
    %v253 = vadd.f32 %v251, %v252
    %v254 = vrot.slane %v253, 1
    %v255 = vadd.f32 %v253, %v254
    %s256 = vtos %v255
    %s257 = scalar_lea.smem [#allocation7], 0
    %258 = sst [smem:[%s257]] %s256
    %v259 = vsel %vm244, %v242, 0.0
    %v260 = vsel %vm244, %v243, 0.0
    %v261 = vadd.f32 %v259, %v260
    %262 = vadd.xlane.f32.xlu0 %v261
    %v263 = vpop.xlane.xlu0 %262
    %v264 = vrot.slane %v263, 4
    %v265 = vadd.f32 %v263, %v264
    %v266 = vrot.slane %v265, 2
    %v267 = vadd.f32 %v265, %v266
    %v268 = vrot.slane %v267, 1
    %v269 = vadd.f32 %v267, %v268
    %s270 = vtos %v269
    %s271 = scalar_lea.smem [#allocation8], 0
    %272 = sst [smem:[%s271]] %s270
    // Predicated region
    $region22: #{tpu_custom_call.1} parent=1 // pred_check
      _
    $region23: #{tpu_custom_call.1} parent=1 // pred_check_branch
      %274 = sbr.rel (0) target = $region25
    $region24: #{tpu_custom_call.1} parent=1 // pred_region
      %s276 = ssub.s32 256, 256
      %277 = vsyncadd [#allocation4], %s276
      %s278 = sshll.u32 [#allocation6], 4
      %s279 = int_to_ptr.vmem [resolvable:$true] %s278
      %284 = dma.vmem_to_hbm [thread:$0]  %s279, 256, %s4, [#allocation4], 128, 128, 8
    $region25: #{tpu_custom_call.1} parent=1 // pred_fallthru
      _
    // Predicated region
    $region26: #{tpu_custom_call.1} parent=1 // pred_check
      _
    $region27: #{tpu_custom_call.1} parent=1 // pred_check_branch
      %286 = sbr.rel (0) target = $region29
    $region28: #{tpu_custom_call.1} parent=1 // pred_region
      %s288 = ssub.s32 16, 16
      %289 = vsyncadd [#allocation5], %s288
      %292 = dma.smem_to_hbm [#allocation7], 16, %s5, [#allocation5]
    $region29: #{tpu_custom_call.1} parent=1 // pred_fallthru
      _
    // Predicated region
    $region30: #{tpu_custom_call.1} parent=1 // pred_check
      _
    $region31: #{tpu_custom_call.1} parent=1 // pred_check_branch
      %294 = sbr.rel (0) target = $region33
    $region32: #{tpu_custom_call.1} parent=1 // pred_region
      %s296 = ssub.s32 16, 16
      %297 = vsyncadd [#allocation9], %s296
      %300 = dma.smem_to_hbm [#allocation8], 16, %s6, [#allocation9]
    $region33: #{tpu_custom_call.1} parent=1 // pred_fallthru
      _
    // Predicated region
    $region34: #{tpu_custom_call.1} parent=1 // pred_check
      _
    $region35: #{tpu_custom_call.1} parent=1 // pred_check_branch
      %302 = sbr.rel (0) target = $region37
    $region36: #{tpu_custom_call.1} parent=1 // pred_region
      %303 = dma.done [#allocation4], 256
    $region37: #{tpu_custom_call.1} parent=1 // pred_fallthru
      _
    // Predicated region
    $region38: #{tpu_custom_call.1} parent=1 // pred_check
      _
    $region39: #{tpu_custom_call.1} parent=1 // pred_check_branch
      %305 = sbr.rel (0) target = $region41
    $region40: #{tpu_custom_call.1} parent=1 // pred_region
      %306 = dma.done [#allocation5], 16
    $region41: #{tpu_custom_call.1} parent=1 // pred_fallthru
      _
    // Predicated region
    $region42: #{tpu_custom_call.1} parent=1 // pred_check
      _
    $region43: #{tpu_custom_call.1} parent=1 // pred_check_branch
      %308 = sbr.rel (0) target = $region45
    $region44: #{tpu_custom_call.1} parent=1 // pred_region
      %309 = dma.done [#allocation9], 16
    $region45: #{tpu_custom_call.1} parent=1 // pred_fallthru
      _
    %310 = sfence
    %311 = vsyncpa [#allocation3], 1
    %312 = vsyncpa [#allocation4], 1
    %313 = vsyncpa [#allocation5], 1
    %314 = vsyncpa [#allocation9], 1

</llo_original>
